<compile_context>
chip_gen: v7x
topology: tpu7x:2x2x1
jax: 0.10.0
libtpu: 0.0.40
codegen_flags: <defaults>
</compile_context>

<pallas_src>
import jax
import jax.numpy as jnp
from jax.experimental import pallas as pl
from jax.experimental.pallas import tpu as pltpu

# ---------------- problem sizes (small, consistent with the module) ----------
M = 3          # num_meta_paths
N = 8          # number of graph nodes
IN = 16        # in_size
D = 8          # out_size (per head)
H = 2          # layer_num_heads
F = H * D      # flattened GAT output feature dim (= SemanticAttention in_size)
HID = 128      # SemanticAttention hidden_size (module default)
C = M * H      # number of (metapath, head) pairs

NEG_SLOPE = 0.2   # GATConv leaky_relu negative slope (DGL default)
MASK_NEG = -1e9   # masked-logit value


# --------------------------- fused HANLayer kernel ---------------------------
def _han_fused_kernel(h_ref, hflat_ref, wcat_ref, warb_ref, kel_ref,
                      adjb_ref, bias_ref, bones_ref, sel_ref,
                      w1bd_ref, b1t_ref, w2bd_ref, eyest_ref, o_ref):
    """Whole HANLayer forward in one grid-less invocation.

    Attention columns are laid out lane-stacked as (c, src) with c = m*H + h,
    so every softmax / mask / activation is a single stacked pass and the
    aggregation + semantic attention are single lane-dense matmuls.
    """
    h = h_ref[...]                                                  # [N, IN]

    # ---- projections (3 matmuls feed the whole attention stage) ------------
    featcat = jnp.dot(h, wcat_ref[...],
                      preferred_element_type=jnp.float32)           # [N, M*F]
    er = jnp.dot(h, warb_ref[...],
                 preferred_element_type=jnp.float32)                # [N, C*N] dest term
    el = jnp.dot(hflat_ref[...], kel_ref[...],
                 preferred_element_type=jnp.float32)                # [1, C*N] source term

    # ---- stacked attention logits for all (metapath, head) pairs -----------
    e = er + el                                                     # e[dst, c*N+src]
    e = jnp.where(e > 0, e, NEG_SLOPE * e)                          # leaky_relu (1 pass)
    logits = e + adjb_ref[...]                                      # additive adjacency mask

    # softmax over src within each (dst, c) group: row-max is shift-invariant
    # per group, group denominators come from one block-ones matmul.
    mx = jnp.max(logits, axis=-1, keepdims=True)                    # [N, 1]
    p = jnp.exp(logits - mx)                                        # masked -> exactly 0
    bones = bones_ref[...]                                          # [C*N, C*N] block-ones
    denom = jnp.dot(p, bones, preferred_element_type=jnp.float32)   # per-group sums (bcast)
    alpha = p / denom                                               # exact divide (tolerance)

    # ---- single block-diagonal aggregation matmul ---------------------------
    blockdiag = jnp.dot(sel_ref[...], featcat,
                        preferred_element_type=jnp.float32) * bones  # [C*N, M*F]
    zb = jnp.dot(alpha, blockdiag,
                 preferred_element_type=jnp.float32)                 # [N, M*F]
    zb = zb + bias_ref[...]                                          # GAT bias (bcast row)
    zb = jnp.where(zb > 0, zb, jnp.exp(zb) - 1.0)                    # ELU (1 pass)

    # ---- semantic attention (z never leaves VMEM) ---------------------------
    proj = jnp.tanh(jnp.dot(zb, w1bd_ref[...],
                            preferred_element_type=jnp.float32)
                    + b1t_ref[...])                                  # [N, M*HID]
    pooled = jnp.sum(proj, axis=0, keepdims=True)                    # [1, M*HID] (1/N folded into w2bd)
    s48 = jnp.dot(pooled, w2bd_ref[...],
                  preferred_element_type=jnp.float32)                # [1, M*F]: w_m repeated F times

    smax = jnp.max(s48, axis=-1, keepdims=True)
    p48 = jnp.exp(s48 - smax)
    lsum = jnp.sum(p48, axis=-1, keepdims=True)                      # = F * sum_m exp(.)
    beta48 = p48 * (float(F) / lsum)                                 # beta_m repeated F times

    # out[n, f] = sum_m beta_m * z[n, m*F + f]  via one identity-stack matmul
    o_ref[...] = jnp.dot(zb * beta48, eyest_ref[...],
                         preferred_element_type=jnp.float32)         # [N, F]


def _vmem_spec():
    return pl.BlockSpec(memory_space=pltpu.MemorySpace.VMEM)


def han_layer_pallas(h, h_flat, wcat, war_b, k_el, adj_ln, bias_row,
                     bones, sel48, w1bd, b1t, w2bd, eyest):
    return pl.pallas_call(
        _han_fused_kernel,
        out_shape=jax.ShapeDtypeStruct((N, F), jnp.float32),
        in_specs=[_vmem_spec() for _ in range(13)],
        out_specs=_vmem_spec(),
        cost_estimate=pl.CostEstimate(
            flops=500_000, transcendentals=4_000, bytes_accessed=200_000),
    )(h, h_flat, wcat, war_b, k_el, adj_ln, bias_row,
      bones, sel48, w1bd, b1t, w2bd, eyest)


# ------------------------------ HANLayer forward -----------------------------
@jax.jit
def han_layer_forward(h, adj, Wg, al, ar, bg, W1, b1, W2):
    f32 = jnp.float32
    eyeN = jnp.eye(N, dtype=f32)

    # ---- weights-only repacking (kron selectors so the kernel body has no
    #      reshapes / transposes / repeats / iotas at all) --------------------
    wcat = jnp.transpose(Wg, (1, 0, 2)).reshape(IN, M * F)            # [IN, M*F]
    Wg4 = Wg.reshape(M, IN, H, D)
    WAL = jnp.einsum('mihd,mhd->imh', Wg4, al).reshape(IN, C)         # source attn weights
    WAR = jnp.einsum('mihd,mhd->imh', Wg4, ar).reshape(IN, C)         # dest attn weights
    war_b = jnp.repeat(WAR, N, axis=1)                                # [IN, C*N]: er bcast over src
    k_el = jnp.einsum('ic,st->sict', WAL, eyeN).reshape(N * IN, C * N)  # [128, 48] kron selector
    bias_row = bg.reshape(1, M * F)                                   # [1, M*F]
    bones = jnp.kron(jnp.eye(C, dtype=f32), jnp.ones((N, N), f32))    # [C*N, C*N] group/block mask
    sel48 = jnp.tile(eyeN, (C, 1))                                    # [C*N, N] row selector
    w1bd = jnp.kron(jnp.eye(M, dtype=f32), W1)                        # [M*F, M*HID]
    b1t = jnp.tile(b1, (1, M))                                        # [1, M*HID]
    w2bd = jnp.kron(jnp.eye(M, dtype=f32),
                    W2 @ jnp.ones((1, F), f32)) / N                   # [M*HID, M*F], 1/N folded in
    eyest = jnp.tile(jnp.eye(F, dtype=f32), (M, 1))                   # [M*F, F] identity stack

    # ---- per-call input repacking (trivial XLA ops on existing inputs) ------
    h_flat = h.reshape(1, N * IN)                                     # zero-cost row-major flatten
    adj_bias = jnp.where(adj > 0.5, 0.0, MASK_NEG)                    # additive mask [M, N, N]
    adj_ln = jnp.transpose(jnp.repeat(adj_bias, H, axis=0),
                           (1, 0, 2)).reshape(N, C * N)               # [N, C*N] lane-stacked

    return han_layer_pallas(h, h_flat, wcat, war_b, k_el, adj_ln, bias_row,
                            bones, sel48, w1bd, b1t, w2bd, eyest)


# ------------------------------ pure-JAX reference ---------------------------
def han_layer_reference(h, adj, Wg, al, ar, bg, W1, b1, W2):
    zs = []
    for m in range(M):
        feat = h @ Wg[m]                             # [N, F]
        fhd = feat.reshape(N, H, D)
        el = (fhd * al[m][None]).sum(-1)             # [N, H]  (source)
        er = (fhd * ar[m][None]).sum(-1)             # [N, H]  (dest)
        e = er[:, None, :] + el[None, :, :]          # [dst, src, H]
        e = jnp.where(e > 0, e, NEG_SLOPE * e)
        logits = jnp.where(adj[m][:, :, None] > 0.5, e, MASK_NEG)
        alpha = jax.nn.softmax(logits, axis=1)       # softmax over src
        rst = jnp.einsum('ijh,jhd->ihd', alpha, fhd) + bg[m][None]
        zs.append(jnp.where(rst > 0, rst, jnp.exp(rst) - 1.0).reshape(N, F))
    z = jnp.stack(zs, axis=0)                        # [M, N, F]
    proj = jnp.tanh(jnp.einsum('mnf,fh->mnh', z, W1) + b1[None, :, :])
    s = jnp.einsum('mnh,hk->mnk', proj, W2)[:, :, 0]  # [M, N]
    w = s.mean(axis=1)                               # [M]
    beta = jax.nn.softmax(w)
    return (beta[:, None, None] * z).sum(0)          # [N, F]


# ------------------------------------ main ------------------------------------
if __name__ == "__main__":
    key = jax.random.PRNGKey(0)
    keys = jax.random.split(key, 10)

    # input node features
    h = jax.random.normal(keys[0], (N, IN), dtype=jnp.float32)

    # dense metapath adjacency matrices adj[m, dst, src], with self loops
    adj = (jax.random.uniform(keys[1], (M, N, N)) < 0.4).astype(jnp.float32)
    eye = jnp.eye(N, dtype=jnp.float32)
    adj = jnp.maximum(adj, eye[None, :, :])

    # per-metapath GATConv parameters
    Wg = 0.2 * jax.random.normal(keys[2], (M, IN, F), dtype=jnp.float32)   # fc weight
    al = 0.2 * jax.random.normal(keys[3], (M, H, D), dtype=jnp.float32)    # attn_l
    ar = 0.2 * jax.random.normal(keys[4], (M, H, D), dtype=jnp.float32)    # attn_r
    bg = 0.1 * jax.random.normal(keys[5], (M, H, D), dtype=jnp.float32)    # bias

    # SemanticAttention parameters
    W1 = 0.2 * jax.random.normal(keys[6], (F, HID), dtype=jnp.float32)
    b1 = 0.1 * jax.random.normal(keys[7], (1, HID), dtype=jnp.float32)
    W2 = 0.2 * jax.random.normal(keys[8], (HID, 1), dtype=jnp.float32)

    out = han_layer_forward(h, adj, Wg, al, ar, bg, W1, b1, W2)
    out = jax.block_until_ready(out)

    ref = han_layer_reference(h, adj, Wg, al, ar, bg, W1, b1, W2)
    assert out.shape == (N, F)
    assert jnp.allclose(out, ref, rtol=1e-4, atol=1e-4), (
        f"max abs err {jnp.max(jnp.abs(out - ref))}")

    print("KERNEL_OK")
</pallas_src>

<mosaic_0001>
module attributes {stable_mosaic.version = 11 : i64} {
  func.func @_han_fused_kernel(%arg0: memref<8x16xf32, #tpu.memory_space<vmem>>, %arg1: memref<1x128xf32, #tpu.memory_space<vmem>>, %arg2: memref<16x48xf32, #tpu.memory_space<vmem>>, %arg3: memref<16x48xf32, #tpu.memory_space<vmem>>, %arg4: memref<128x48xf32, #tpu.memory_space<vmem>>, %arg5: memref<8x48xf32, #tpu.memory_space<vmem>>, %arg6: memref<1x48xf32, #tpu.memory_space<vmem>>, %arg7: memref<48x48xf32, #tpu.memory_space<vmem>>, %arg8: memref<48x8xf32, #tpu.memory_space<vmem>>, %arg9: memref<48x384xf32, #tpu.memory_space<vmem>>, %arg10: memref<1x384xf32, #tpu.memory_space<vmem>>, %arg11: memref<384x48xf32, #tpu.memory_space<vmem>>, %arg12: memref<48x16xf32, #tpu.memory_space<vmem>>, %arg13: memref<8x16xf32, #tpu.memory_space<vmem>>) attributes {dimension_semantics = [], scalar_prefetch = 0 : i64, scratch_operands = 0 : i64, tpu.core_type = #tpu.core_type<tc>} {
    %c0 = arith.constant 0 : index
    %c0_0 = arith.constant 0 : index
    %0 = vector.load %arg0[%c0, %c0_0] : memref<8x16xf32, #tpu.memory_space<vmem>>, vector<8x16xf32>
    %c0_1 = arith.constant 0 : index
    %c0_2 = arith.constant 0 : index
    %1 = vector.load %arg2[%c0_1, %c0_2] : memref<16x48xf32, #tpu.memory_space<vmem>>, vector<16x48xf32>
    %cst = arith.constant dense<0.000000e+00> : vector<8x48xf32>
    %2 = tpu.matmul %0, %1, %cst {dimension_numbers = #tpu.dot_dimension_numbers<[1], [0], [0], [1], [0, 0, 1, 1], [], []>} : vector<8x16xf32>, vector<16x48xf32>, vector<8x48xf32> -> vector<8x48xf32>
    %c0_3 = arith.constant 0 : index
    %c0_4 = arith.constant 0 : index
    %3 = vector.load %arg3[%c0_3, %c0_4] : memref<16x48xf32, #tpu.memory_space<vmem>>, vector<16x48xf32>
    %cst_5 = arith.constant dense<0.000000e+00> : vector<8x48xf32>
    %4 = tpu.matmul %0, %3, %cst_5 {dimension_numbers = #tpu.dot_dimension_numbers<[1], [0], [0], [1], [0, 0, 1, 1], [], []>} : vector<8x16xf32>, vector<16x48xf32>, vector<8x48xf32> -> vector<8x48xf32>
    %c0_6 = arith.constant 0 : index
    %c0_7 = arith.constant 0 : index
    %5 = vector.load %arg1[%c0_6, %c0_7] : memref<1x128xf32, #tpu.memory_space<vmem>>, vector<1x128xf32>
    %c0_8 = arith.constant 0 : index
    %c0_9 = arith.constant 0 : index
    %6 = vector.load %arg4[%c0_8, %c0_9] : memref<128x48xf32, #tpu.memory_space<vmem>>, vector<128x48xf32>
    %cst_10 = arith.constant dense<0.000000e+00> : vector<1x48xf32>
    %7 = tpu.matmul %5, %6, %cst_10 {dimension_numbers = #tpu.dot_dimension_numbers<[1], [0], [0], [1], [0, 0, 1, 1], [], []>} : vector<1x128xf32>, vector<128x48xf32>, vector<1x48xf32> -> vector<1x48xf32>
    %8 = vector.broadcast %7 : vector<1x48xf32> to vector<8x48xf32>
    %9 = arith.addf %4, %8 : vector<8x48xf32>
    %cst_11 = arith.constant 0.000000e+00 : f32
    %10 = vector.broadcast %cst_11 : f32 to vector<8x48xf32>
    %11 = arith.cmpf ogt, %9, %10 : vector<8x48xf32>
    %cst_12 = arith.constant 2.000000e-01 : f32
    %12 = vector.broadcast %cst_12 : f32 to vector<8x48xf32>
    %13 = arith.mulf %12, %9 : vector<8x48xf32>
    %14 = arith.select %11, %9, %13 : vector<8x48xi1>, vector<8x48xf32>
    %c0_13 = arith.constant 0 : index
    %c0_14 = arith.constant 0 : index
    %15 = vector.load %arg5[%c0_13, %c0_14] : memref<8x48xf32, #tpu.memory_space<vmem>>, vector<8x48xf32>
    %16 = vector.shape_cast %15 : vector<8x48xf32> to vector<8x48xf32>
    %17 = arith.addf %14, %16 : vector<8x48xf32>
    %cst_15 = arith.constant dense<0xFF800000> : vector<8xf32>
    %18 = vector.multi_reduction <maximumf>, %17, %cst_15 [1] : vector<8x48xf32> to vector<8xf32>
    %19 = vector.shape_cast %18 : vector<8xf32> to vector<8x1xf32>
    %20 = vector.broadcast %19 : vector<8x1xf32> to vector<8x48xf32>
    %21 = arith.subf %17, %20 : vector<8x48xf32>
    %22 = math.exp %21 : vector<8x48xf32>
    %c0_16 = arith.constant 0 : index
    %c0_17 = arith.constant 0 : index
    %23 = vector.load %arg7[%c0_16, %c0_17] : memref<48x48xf32, #tpu.memory_space<vmem>>, vector<48x48xf32>
    %cst_18 = arith.constant dense<0.000000e+00> : vector<8x48xf32>
    %24 = tpu.matmul %22, %23, %cst_18 {dimension_numbers = #tpu.dot_dimension_numbers<[1], [0], [0], [1], [0, 0, 1, 1], [], []>} : vector<8x48xf32>, vector<48x48xf32>, vector<8x48xf32> -> vector<8x48xf32>
    %25 = arith.divf %22, %24 : vector<8x48xf32>
    %c0_19 = arith.constant 0 : index
    %c0_20 = arith.constant 0 : index
    %26 = vector.load %arg8[%c0_19, %c0_20] : memref<48x8xf32, #tpu.memory_space<vmem>>, vector<48x8xf32>
    %cst_21 = arith.constant dense<0.000000e+00> : vector<48x48xf32>
    %27 = tpu.matmul %26, %2, %cst_21 {dimension_numbers = #tpu.dot_dimension_numbers<[1], [0], [0], [1], [0, 0, 1, 1], [], []>} : vector<48x8xf32>, vector<8x48xf32>, vector<48x48xf32> -> vector<48x48xf32>
    %28 = arith.mulf %27, %23 : vector<48x48xf32>
    %cst_22 = arith.constant dense<0.000000e+00> : vector<8x48xf32>
    %29 = tpu.matmul %25, %28, %cst_22 {dimension_numbers = #tpu.dot_dimension_numbers<[1], [0], [0], [1], [0, 0, 1, 1], [], []>} : vector<8x48xf32>, vector<48x48xf32>, vector<8x48xf32> -> vector<8x48xf32>
    %c0_23 = arith.constant 0 : index
    %c0_24 = arith.constant 0 : index
    %30 = vector.load %arg6[%c0_23, %c0_24] : memref<1x48xf32, #tpu.memory_space<vmem>>, vector<1x48xf32>
    %31 = vector.broadcast %30 : vector<1x48xf32> to vector<8x48xf32>
    %32 = arith.addf %29, %31 : vector<8x48xf32>
    %cst_25 = arith.constant 0.000000e+00 : f32
    %33 = vector.broadcast %cst_25 : f32 to vector<8x48xf32>
    %34 = arith.cmpf ogt, %32, %33 : vector<8x48xf32>
    %35 = math.exp %32 : vector<8x48xf32>
    %cst_26 = arith.constant 1.000000e+00 : f32
    %36 = vector.broadcast %cst_26 : f32 to vector<8x48xf32>
    %37 = arith.subf %35, %36 : vector<8x48xf32>
    %38 = arith.select %34, %32, %37 : vector<8x48xi1>, vector<8x48xf32>
    %c0_27 = arith.constant 0 : index
    %c0_28 = arith.constant 0 : index
    %39 = vector.load %arg9[%c0_27, %c0_28] : memref<48x384xf32, #tpu.memory_space<vmem>>, vector<48x384xf32>
    %cst_29 = arith.constant dense<0.000000e+00> : vector<8x384xf32>
    %40 = tpu.matmul %38, %39, %cst_29 {dimension_numbers = #tpu.dot_dimension_numbers<[1], [0], [0], [1], [0, 0, 1, 1], [], []>} : vector<8x48xf32>, vector<48x384xf32>, vector<8x384xf32> -> vector<8x384xf32>
    %c0_30 = arith.constant 0 : index
    %c0_31 = arith.constant 0 : index
    %41 = vector.load %arg10[%c0_30, %c0_31] : memref<1x384xf32, #tpu.memory_space<vmem>>, vector<1x384xf32>
    %42 = vector.broadcast %41 : vector<1x384xf32> to vector<8x384xf32>
    %43 = arith.addf %40, %42 : vector<8x384xf32>
    %44 = math.tanh %43 : vector<8x384xf32>
    %cst_32 = arith.constant dense<0.000000e+00> : vector<384xf32>
    %45 = vector.multi_reduction <add>, %44, %cst_32 [0] : vector<8x384xf32> to vector<384xf32>
    %46 = vector.shape_cast %45 : vector<384xf32> to vector<1x384xf32>
    %c0_33 = arith.constant 0 : index
    %c0_34 = arith.constant 0 : index
    %47 = vector.load %arg11[%c0_33, %c0_34] : memref<384x48xf32, #tpu.memory_space<vmem>>, vector<384x48xf32>
    %cst_35 = arith.constant dense<0.000000e+00> : vector<1x48xf32>
    %48 = tpu.matmul %46, %47, %cst_35 {dimension_numbers = #tpu.dot_dimension_numbers<[1], [0], [0], [1], [0, 0, 1, 1], [], []>} : vector<1x384xf32>, vector<384x48xf32>, vector<1x48xf32> -> vector<1x48xf32>
    %cst_36 = arith.constant dense<0xFF800000> : vector<1xf32>
    %49 = vector.multi_reduction <maximumf>, %48, %cst_36 [1] : vector<1x48xf32> to vector<1xf32>
    %50 = vector.shape_cast %49 : vector<1xf32> to vector<1x1xf32>
    %51 = vector.broadcast %50 : vector<1x1xf32> to vector<1x48xf32>
    %52 = arith.subf %48, %51 : vector<1x48xf32>
    %53 = math.exp %52 : vector<1x48xf32>
    %cst_37 = arith.constant dense<0.000000e+00> : vector<1xf32>
    %54 = vector.multi_reduction <add>, %53, %cst_37 [1] : vector<1x48xf32> to vector<1xf32>
    %55 = vector.shape_cast %54 : vector<1xf32> to vector<1x1xf32>
    %cst_38 = arith.constant 1.600000e+01 : f32
    %56 = vector.broadcast %cst_38 : f32 to vector<1x1xf32>
    %57 = arith.divf %56, %55 : vector<1x1xf32>
    %58 = vector.broadcast %57 : vector<1x1xf32> to vector<1x48xf32>
    %59 = arith.mulf %53, %58 : vector<1x48xf32>
    %60 = vector.broadcast %59 : vector<1x48xf32> to vector<8x48xf32>
    %61 = arith.mulf %38, %60 : vector<8x48xf32>
    %c0_39 = arith.constant 0 : index
    %c0_40 = arith.constant 0 : index
    %62 = vector.load %arg12[%c0_39, %c0_40] : memref<48x16xf32, #tpu.memory_space<vmem>>, vector<48x16xf32>
    %cst_41 = arith.constant dense<0.000000e+00> : vector<8x16xf32>
    %63 = tpu.matmul %61, %62, %cst_41 {dimension_numbers = #tpu.dot_dimension_numbers<[1], [0], [0], [1], [0, 0, 1, 1], [], []>} : vector<8x48xf32>, vector<48x16xf32>, vector<8x16xf32> -> vector<8x16xf32>
    %c0_42 = arith.constant 0 : index
    %c0_43 = arith.constant 0 : index
    %64 = vector.load %arg13[%c0_42, %c0_43] : memref<8x16xf32, #tpu.memory_space<vmem>>, vector<8x16xf32>
    tpu.vector_store %arg13[%c0_42, %c0_43], %63 {strides = array<i32>} : memref<8x16xf32, #tpu.memory_space<vmem>>, vector<8x16xf32>,
    return
  }
}

</mosaic_0001>

<llo_original>
// kernel: han_layer_forward.1
$region0: #{han_layer_forward.1}
  #allocation0 [shape = 'u32[]', space=smem, size = 0x4, offset = 0x4, fixed_abs, tag = 'smem constant byte address 0x4 - core index']
  #allocation1 [shape = 'u32[144,128]{1,0:T(1,128)}', space=vmem, size = 0x12000, scoped, tag = 'internal scratch']
  %s0 = inlined_call_operand.vmem [shape: f32[8,16], index: 0, kind: input, shape index: {}]
  %s1 = inlined_call_operand.vmem [shape: f32[1,128], index: 1, kind: input, shape index: {}]
  %s2 = inlined_call_operand.vmem [shape: f32[16,48], index: 2, kind: input, shape index: {}]
  %s3 = inlined_call_operand.vmem [shape: f32[16,48], index: 3, kind: input, shape index: {}]
  %s4 = inlined_call_operand.vmem [shape: f32[128,48], index: 4, kind: input, shape index: {}]
  %s5 = inlined_call_operand.vmem [shape: f32[8,48], index: 5, kind: input, shape index: {}]
  %s6 = inlined_call_operand.vmem [shape: f32[1,48], index: 6, kind: input, shape index: {}]
  %s7 = inlined_call_operand.vmem [shape: f32[48,48], index: 7, kind: input, shape index: {}]
  %s8 = inlined_call_operand.vmem [shape: f32[48,8], index: 8, kind: input, shape index: {}]
  %s9 = inlined_call_operand.vmem [shape: f32[48,384], index: 9, kind: input, shape index: {}]
  %s10 = inlined_call_operand.vmem [shape: f32[1,384], index: 10, kind: input, shape index: {}]
  %s11 = inlined_call_operand.vmem [shape: f32[384,48], index: 11, kind: input, shape index: {}]
  %s12 = inlined_call_operand.vmem [shape: f32[48,16], index: 12, kind: input, shape index: {}]
  %s13 = inlined_call_operand.hbm [shape: f32[8,16], index: 13, kind: output, shape index: {}]
  %s14 = sld [smem:[#allocation0]]
  $region62: #{han_layer_forward.1} parent=0
    _
  %s16 = ssub.s32 1, %s14
  %s17 = scalar_select 0, %s16, %s14
  $region1: #{han_layer_forward.1} parent=0
    #allocation2 [shape = 'u8[4096]{0}', space=vmem, size = 0x1000, scoped, tag = 'output window, operand 0, single buffered']
    #allocation3 [shape = 's32[1]{0}', space=sflag, size = 0x4, scoped, tag = 'scoped memory for han_layer_forward.1']
    %18 = vsyncpa [#allocation3], 0
    // Predicated region
    $region2: #{han_layer_forward.1} parent=1 // pred_check
      _
    $region3: #{han_layer_forward.1} parent=1 // pred_check_branch
      %20 = sbr.rel (0) target = $region5
    $region4: #{han_layer_forward.1} parent=1 // pred_region
      _
    $region5: #{han_layer_forward.1} parent=1 // pred_fallthru
      _
    // Predicated region
    $region6: #{han_layer_forward.1} parent=1 // pred_check
      _
    $region7: #{han_layer_forward.1} parent=1 // pred_check_branch
      %22 = sbr.rel (0) target = $region9
    $region8: #{han_layer_forward.1} parent=1 // pred_region
      _
    $region9: #{han_layer_forward.1} parent=1 // pred_fallthru
      _
    // Predicated region
    $region10: #{han_layer_forward.1} parent=1 // pred_check
      _
    $region11: #{han_layer_forward.1} parent=1 // pred_check_branch
      %24 = sbr.rel (0) target = $region13
    $region12: #{han_layer_forward.1} parent=1 // pred_region
      _
    $region13: #{han_layer_forward.1} parent=1 // pred_fallthru
      _
    // Predicated region
    $region14: #{han_layer_forward.1} parent=1 // pred_check
      _
    $region15: #{han_layer_forward.1} parent=1 // pred_check_branch
      %26 = sbr.rel (0) target = $region17
    $region16: #{han_layer_forward.1} parent=1 // pred_region
      _
    $region17: #{han_layer_forward.1} parent=1 // pred_fallthru
      _
    // Predicated region
    $region18: #{han_layer_forward.1} parent=1 // pred_check
      _
    $region19: #{han_layer_forward.1} parent=1 // pred_check_branch
      %28 = sbr.rel (0) target = $region21
    $region20: #{han_layer_forward.1} parent=1 // pred_region
      _
    $region21: #{han_layer_forward.1} parent=1 // pred_fallthru
      _
    // Predicated region
    $region22: #{han_layer_forward.1} parent=1 // pred_check
      _
    $region23: #{han_layer_forward.1} parent=1 // pred_check_branch
      %30 = sbr.rel (0) target = $region25
    $region24: #{han_layer_forward.1} parent=1 // pred_region
      _
    $region25: #{han_layer_forward.1} parent=1 // pred_fallthru
      _
    // Predicated region
    $region26: #{han_layer_forward.1} parent=1 // pred_check
      _
    $region27: #{han_layer_forward.1} parent=1 // pred_check_branch
      %32 = sbr.rel (0) target = $region29
    $region28: #{han_layer_forward.1} parent=1 // pred_region
      _
    $region29: #{han_layer_forward.1} parent=1 // pred_fallthru
      _
    // Predicated region
    $region30: #{han_layer_forward.1} parent=1 // pred_check
      _
    $region31: #{han_layer_forward.1} parent=1 // pred_check_branch
      %34 = sbr.rel (0) target = $region33
    $region32: #{han_layer_forward.1} parent=1 // pred_region
      _
    $region33: #{han_layer_forward.1} parent=1 // pred_fallthru
      _
    // Predicated region
    $region34: #{han_layer_forward.1} parent=1 // pred_check
      _
    $region35: #{han_layer_forward.1} parent=1 // pred_check_branch
      %36 = sbr.rel (0) target = $region37
    $region36: #{han_layer_forward.1} parent=1 // pred_region
      _
    $region37: #{han_layer_forward.1} parent=1 // pred_fallthru
      _
    // Predicated region
    $region38: #{han_layer_forward.1} parent=1 // pred_check
      _
    $region39: #{han_layer_forward.1} parent=1 // pred_check_branch
      %38 = sbr.rel (0) target = $region41
    $region40: #{han_layer_forward.1} parent=1 // pred_region
      _
    $region41: #{han_layer_forward.1} parent=1 // pred_fallthru
      _
    // Predicated region
    $region42: #{han_layer_forward.1} parent=1 // pred_check
      _
    $region43: #{han_layer_forward.1} parent=1 // pred_check_branch
      %40 = sbr.rel (0) target = $region45
    $region44: #{han_layer_forward.1} parent=1 // pred_region
      _
    $region45: #{han_layer_forward.1} parent=1 // pred_fallthru
      _
    // Predicated region
    $region46: #{han_layer_forward.1} parent=1 // pred_check
      _
    $region47: #{han_layer_forward.1} parent=1 // pred_check_branch
      %42 = sbr.rel (0) target = $region49
    $region48: #{han_layer_forward.1} parent=1 // pred_region
      _
    $region49: #{han_layer_forward.1} parent=1 // pred_fallthru
      _
    // Predicated region
    $region50: #{han_layer_forward.1} parent=1 // pred_check
      _
    $region51: #{han_layer_forward.1} parent=1 // pred_check_branch
      %44 = sbr.rel (0) target = $region53
    $region52: #{han_layer_forward.1} parent=1 // pred_region
      _
    $region53: #{han_layer_forward.1} parent=1 // pred_fallthru
      _
    %v45 = vld [vmem:[%s0] sm:$0xff]
    %v46 = vld [vmem:[%s2] sm:$0xff]
    %v47 = vld [vmem:[%s2 + $0x8] sm:$0xff]
    %vm48 = vcmask 130048
    %v50 = vsel %vm48, %v45, 0
    %52 = vmatprep.subr.mxu0 0.0
    %53 = vmatpush1.msra.mxu0 %v46
    %54 = vmatprep.subr.mxu0 0.0
    %55 = vmatpush1.msra.mxu0 %v47
    %56 = vmatprep.subr.mxu0 0.0
    %57 = vmatpush1.msra.mxu0 0.0
    %58 = vmatprep.subr.mxu0 0.0
    %59 = vmatpush1.msra.mxu0 0.0
    %60 = vmatprep.subr.mxu0 0.0
    %61 = vmatpush1.msra.mxu0 0.0
    %62 = vmatprep.subr.mxu0 0.0
    %63 = vmatpush1.msra.mxu0 0.0
    %64 = vmatprep.subr.mxu0 0.0
    %65 = vmatpush1.msra.mxu0 0.0
    %66 = vmatprep.subr.mxu0 0.0
    %67 = vmatpush1.msra.mxu0 0.0
    %68 = vmatprep.subr.mxu0 0.0
    %69 = vmatpush1.msra.mxu0 0.0
    %70 = vmatprep.subr.mxu0 0.0
    %71 = vmatpush1.msra.mxu0 0.0
    %72 = vmatprep.subr.mxu0 0.0
    %73 = vmatpush1.msra.mxu0 0.0
    %74 = vmatprep.subr.mxu0 0.0
    %75 = vmatpush1.msra.mxu0 0.0
    %76 = vmatprep.subr.mxu0 0.0
    %77 = vmatpush1.msra.mxu0 0.0
    %78 = vmatprep.subr.mxu0 0.0
    %79 = vmatpush1.msra.mxu0 0.0
    %80 = vmatprep.subr.mxu0 0.0
    %81 = vmatpush1.msra.mxu0 0.0
    %82 = vmatprep.subr.mxu0 0.0
    %83 = vmatpush1.msra.mxu0 0.0
    %84 = vmatprep.subr.mxu0 0.0
    %85 = vmatpush1.msra.mxu0 0.0
    %86 = vmatprep.subr.mxu0 0.0
    %87 = vmatpush1.msra.mxu0 0.0
    %88 = vmatprep.subr.mxu0 0.0
    %89 = vmatpush1.msra.mxu0 0.0
    %90 = vmatprep.subr.mxu0 0.0
    %91 = vmatpush1.msra.mxu0 0.0
    %92 = vmatprep.subr.mxu0 0.0
    %93 = vmatpush1.msra.mxu0 0.0
    %94 = vmatprep.subr.mxu0 0.0
    %95 = vmatpush1.msra.mxu0 0.0
    %96 = vmatprep.subr.mxu0 0.0
    %97 = vmatpush1.msra.mxu0 0.0
    %98 = vmatprep.subr.mxu0 0.0
    %99 = vmatpush1.msra.mxu0 0.0
    %100 = vmatprep.subr.mxu0 0.0
    %101 = vmatpush1.msra.mxu0 0.0
    %102 = vmatprep.subr.mxu0 0.0
    %103 = vmatpush1.msra.mxu0 0.0
    %104 = vmatprep.subr.mxu0 0.0
    %105 = vmatpush1.msra.mxu0 0.0
    %106 = vmatprep.subr.mxu0 0.0
    %107 = vmatpush1.msra.mxu0 0.0
    %108 = vmatprep.subr.mxu0 0.0
    %109 = vmatpush1.msra.mxu0 0.0
    %110 = vmatprep.subr.mxu0 0.0
    %111 = vmatpush1.msra.mxu0 0.0
    %112 = vmatprep.subr.mxu0 0.0
    %113 = vmatpush1.msra.mxu0 0.0
    %114 = vmatprep.subr.mxu0 0.0
    %115 = vmatpush1.msra.mxu0 0.0
    %116 = vmatprep.mubr.f32.mxu0 0.0
    %117 = vmatmul.mubr.f32.gmra.mrb[0].mxu0 %v50
    %v118 = vpop.f32.mrb[0].mxu0
    %v119 = vadd.f32 0.0, %v118
    %v120 = vpop.f32.mrb[0].mxu0
    %121 = vdwg.mxu0
    %v122 = vld [vmem:[%s3] sm:$0xff]
    %v123 = vld [vmem:[%s3 + $0x8] sm:$0xff]
    %v124 = vld [vmem:[%s1] sm:$0x1]
    %v125 = vld [vmem:[%s4] sm:$0xff]
    %v126 = vld [vmem:[%s4 + $0x8] sm:$0xff]
    %v127 = vld [vmem:[%s4 + $0x10] sm:$0xff]
    %v128 = vld [vmem:[%s4 + $0x18] sm:$0xff]
    %v129 = vld [vmem:[%s4 + $0x20] sm:$0xff]
    %v130 = vld [vmem:[%s4 + $0x28] sm:$0xff]
    %v131 = vld [vmem:[%s4 + $0x30] sm:$0xff]
    %v132 = vld [vmem:[%s4 + $0x38] sm:$0xff]
    %v133 = vld [vmem:[%s4 + $0x40] sm:$0xff]
    %v134 = vld [vmem:[%s4 + $0x48] sm:$0xff]
    %v135 = vld [vmem:[%s4 + $0x50] sm:$0xff]
    %v136 = vld [vmem:[%s4 + $0x58] sm:$0xff]
    %v137 = vld [vmem:[%s4 + $0x60] sm:$0xff]
    %v138 = vld [vmem:[%s4 + $0x68] sm:$0xff]
    %v139 = vld [vmem:[%s4 + $0x70] sm:$0xff]
    %v140 = vld [vmem:[%s4 + $0x78] sm:$0xff]
    %141 = vmatprep.subr.mxu0 0.0
    %142 = vmatpush1.msra.mxu0 %v125
    %143 = vmatprep.subr.mxu0 0.0
    %144 = vmatpush1.msra.mxu0 %v126
    %145 = vmatprep.subr.mxu0 0.0
    %146 = vmatpush1.msra.mxu0 %v127
    %147 = vmatprep.subr.mxu0 0.0
    %148 = vmatpush1.msra.mxu0 %v128
    %149 = vmatprep.subr.mxu0 0.0
    %150 = vmatpush1.msra.mxu0 %v129
    %151 = vmatprep.subr.mxu0 0.0
    %152 = vmatpush1.msra.mxu0 %v130
    %153 = vmatprep.subr.mxu0 0.0
    %154 = vmatpush1.msra.mxu0 %v131
    %155 = vmatprep.subr.mxu0 0.0
    %156 = vmatpush1.msra.mxu0 %v132
    %157 = vmatprep.subr.mxu0 0.0
    %158 = vmatpush1.msra.mxu0 %v133
    %159 = vmatprep.subr.mxu0 0.0
    %160 = vmatpush1.msra.mxu0 %v134
    %161 = vmatprep.subr.mxu0 0.0
    %162 = vmatpush1.msra.mxu0 %v135
    %163 = vmatprep.subr.mxu0 0.0
    %164 = vmatpush1.msra.mxu0 %v136
    %165 = vmatprep.subr.mxu0 0.0
    %166 = vmatpush1.msra.mxu0 %v137
    %167 = vmatprep.subr.mxu0 0.0
    %168 = vmatpush1.msra.mxu0 %v138
    %169 = vmatprep.subr.mxu0 0.0
    %170 = vmatpush1.msra.mxu0 %v139
    %171 = vmatprep.subr.mxu0 0.0
    %172 = vmatpush1.msra.mxu0 %v140
    %173 = vmatprep.subr.mxu0 0.0
    %174 = vmatpush1.msra.mxu0 0.0
    %175 = vmatprep.subr.mxu0 0.0
    %176 = vmatpush1.msra.mxu0 0.0
    %177 = vmatprep.subr.mxu0 0.0
    %178 = vmatpush1.msra.mxu0 0.0
    %179 = vmatprep.subr.mxu0 0.0
    %180 = vmatpush1.msra.mxu0 0.0
    %181 = vmatprep.subr.mxu0 0.0
    %182 = vmatpush1.msra.mxu0 0.0
    %183 = vmatprep.subr.mxu0 0.0
    %184 = vmatpush1.msra.mxu0 0.0
    %185 = vmatprep.subr.mxu0 0.0
    %186 = vmatpush1.msra.mxu0 0.0
    %187 = vmatprep.subr.mxu0 0.0
    %188 = vmatpush1.msra.mxu0 0.0
    %189 = vmatprep.subr.mxu0 0.0
    %190 = vmatpush1.msra.mxu0 0.0
    %191 = vmatprep.subr.mxu0 0.0
    %192 = vmatpush1.msra.mxu0 0.0
    %193 = vmatprep.subr.mxu0 0.0
    %194 = vmatpush1.msra.mxu0 0.0
    %195 = vmatprep.subr.mxu0 0.0
    %196 = vmatpush1.msra.mxu0 0.0
    %197 = vmatprep.subr.mxu0 0.0
    %198 = vmatpush1.msra.mxu0 0.0
    %199 = vmatprep.subr.mxu0 0.0
    %200 = vmatpush1.msra.mxu0 0.0
    %201 = vmatprep.subr.mxu0 0.0
    %202 = vmatpush1.msra.mxu0 0.0
    %203 = vmatprep.subr.mxu0 0.0
    %204 = vmatpush1.msra.mxu0 0.0
    %205 = vmatprep.mubr.f32.mxu0 0.0
    %206 = vmatmul.mubr.f32.gmra.mrb[0].mxu0 %v124
    %v207 = vpop.f32.mrb[0].mxu0
    %v208 = vadd.f32 0.0, %v207
    %v209 = vpop.f32.mrb[0].mxu0
    %210 = vdwg.mxu0
    %v211 = vlaneseq
    %v212 = vshrl.u32 %v211, 7
    %v213 = vsub.s32 0, %v212
    %v214 = vrot.slane %v208, %v213
    %215 = vmatprep.subr.mxu0 0.0
    %216 = vmatpush1.msra.mxu0 %v122
    %217 = vmatprep.subr.mxu0 0.0
    %218 = vmatpush1.msra.mxu0 %v123
    %219 = vmatprep.subr.mxu0 0.0
    %220 = vmatpush1.msra.mxu0 0.0
    %221 = vmatprep.subr.mxu0 0.0
    %222 = vmatpush1.msra.mxu0 0.0
    %223 = vmatprep.subr.mxu0 0.0
    %224 = vmatpush1.msra.mxu0 0.0
    %225 = vmatprep.subr.mxu0 0.0
    %226 = vmatpush1.msra.mxu0 0.0
    %227 = vmatprep.subr.mxu0 0.0
    %228 = vmatpush1.msra.mxu0 0.0
    %229 = vmatprep.subr.mxu0 0.0
    %230 = vmatpush1.msra.mxu0 0.0
    %231 = vmatprep.subr.mxu0 0.0
    %232 = vmatpush1.msra.mxu0 0.0
    %233 = vmatprep.subr.mxu0 0.0
    %234 = vmatpush1.msra.mxu0 0.0
    %235 = vmatprep.subr.mxu0 0.0
    %236 = vmatpush1.msra.mxu0 0.0
    %237 = vmatprep.subr.mxu0 0.0
    %238 = vmatpush1.msra.mxu0 0.0
    %239 = vmatprep.subr.mxu0 0.0
    %240 = vmatpush1.msra.mxu0 0.0
    %241 = vmatprep.subr.mxu0 0.0
    %242 = vmatpush1.msra.mxu0 0.0
    %243 = vmatprep.subr.mxu0 0.0
    %244 = vmatpush1.msra.mxu0 0.0
    %245 = vmatprep.subr.mxu0 0.0
    %246 = vmatpush1.msra.mxu0 0.0
    %247 = vmatprep.subr.mxu0 0.0
    %248 = vmatpush1.msra.mxu0 0.0
    %249 = vmatprep.subr.mxu0 0.0
    %250 = vmatpush1.msra.mxu0 0.0
    %251 = vmatprep.subr.mxu0 0.0
    %252 = vmatpush1.msra.mxu0 0.0
    %253 = vmatprep.subr.mxu0 0.0
    %254 = vmatpush1.msra.mxu0 0.0
    %255 = vmatprep.subr.mxu0 0.0
    %256 = vmatpush1.msra.mxu0 0.0
    %257 = vmatprep.subr.mxu0 0.0
    %258 = vmatpush1.msra.mxu0 0.0
    %259 = vmatprep.subr.mxu0 0.0
    %260 = vmatpush1.msra.mxu0 0.0
    %261 = vmatprep.subr.mxu0 0.0
    %262 = vmatpush1.msra.mxu0 0.0
    %263 = vmatprep.subr.mxu0 0.0
    %264 = vmatpush1.msra.mxu0 0.0
    %265 = vmatprep.subr.mxu0 0.0
    %266 = vmatpush1.msra.mxu0 0.0
    %267 = vmatprep.subr.mxu0 0.0
    %268 = vmatpush1.msra.mxu0 0.0
    %269 = vmatprep.subr.mxu0 0.0
    %270 = vmatpush1.msra.mxu0 0.0
    %271 = vmatprep.subr.mxu0 0.0
    %272 = vmatpush1.msra.mxu0 0.0
    %273 = vmatprep.subr.mxu0 0.0
    %274 = vmatpush1.msra.mxu0 0.0
    %275 = vmatprep.subr.mxu0 0.0
    %276 = vmatpush1.msra.mxu0 0.0
    %277 = vmatprep.subr.mxu0 0.0
    %278 = vmatpush1.msra.mxu0 0.0
    %279 = vmatprep.mubr.f32.mxu0 0.0
    %280 = vmatmul.mubr.f32.gmra.mrb[0].mxu0 %v50
    %v281 = vpop.f32.mrb[0].mxu0
    %v282 = vadd.f32 %v214, %v281
    %v283 = vpop.f32.mrb[0].mxu0
    %284 = vdwg.mxu0
    %vm285 = vcmp.gt.f32.partialorder %v282, 0.0
    %v286 = vmul.f32 %v282, 0.2
    %v287 = vsel %vm285, %v282, %v286
    %v288 = vld [vmem:[%s5] sm:$0xff]
    %v289 = vadd.f32 %v287, %v288
    %vm290 = vcmask 392192
    %v291 = vsel %vm290, %v289, -inf
    %292 = vmax.xlane.f32.xlu0 %v291
    %v293 = vpop.xlane.xlu0 %292
    %v294 = vsub.f32 %v289, %v293
    %v295 = vmul.f32 %v294, 1.442695
    %v296 = vpow.pop %v295
    %v297 = vld [vmem:[%s7] sm:$0xff]
    %v298 = vld [vmem:[%s7 + $0x8] sm:$0xff]
    %v299 = vld [vmem:[%s7 + $0x10] sm:$0xff]
    %v300 = vld [vmem:[%s7 + $0x18] sm:$0xff]
    %v301 = vld [vmem:[%s7 + $0x20] sm:$0xff]
    %v302 = vld [vmem:[%s7 + $0x28] sm:$0xff]
    %v304 = vsel %vm290, %v296, 0
    %306 = vmatprep.subr.mxu0 0.0
    %307 = vmatpush1.msra.mxu0 %v297
    %308 = vmatprep.subr.mxu0 0.0
    %309 = vmatpush1.msra.mxu0 %v298
    %310 = vmatprep.subr.mxu0 0.0
    %311 = vmatpush1.msra.mxu0 %v299
    %312 = vmatprep.subr.mxu0 0.0
    %313 = vmatpush1.msra.mxu0 %v300
    %314 = vmatprep.subr.mxu0 0.0
    %315 = vmatpush1.msra.mxu0 %v301
    %316 = vmatprep.subr.mxu0 0.0
    %317 = vmatpush1.msra.mxu0 %v302
    %318 = vmatprep.subr.mxu0 0.0
    %319 = vmatpush1.msra.mxu0 0.0
    %320 = vmatprep.subr.mxu0 0.0
    %321 = vmatpush1.msra.mxu0 0.0
    %322 = vmatprep.subr.mxu0 0.0
    %323 = vmatpush1.msra.mxu0 0.0
    %324 = vmatprep.subr.mxu0 0.0
    %325 = vmatpush1.msra.mxu0 0.0
    %326 = vmatprep.subr.mxu0 0.0
    %327 = vmatpush1.msra.mxu0 0.0
    %328 = vmatprep.subr.mxu0 0.0
    %329 = vmatpush1.msra.mxu0 0.0
    %330 = vmatprep.subr.mxu0 0.0
    %331 = vmatpush1.msra.mxu0 0.0
    %332 = vmatprep.subr.mxu0 0.0
    %333 = vmatpush1.msra.mxu0 0.0
    %334 = vmatprep.subr.mxu0 0.0
    %335 = vmatpush1.msra.mxu0 0.0
    %336 = vmatprep.subr.mxu0 0.0
    %337 = vmatpush1.msra.mxu0 0.0
    %338 = vmatprep.subr.mxu0 0.0
    %339 = vmatpush1.msra.mxu0 0.0
    %340 = vmatprep.subr.mxu0 0.0
    %341 = vmatpush1.msra.mxu0 0.0
    %342 = vmatprep.subr.mxu0 0.0
    %343 = vmatpush1.msra.mxu0 0.0
    %344 = vmatprep.subr.mxu0 0.0
    %345 = vmatpush1.msra.mxu0 0.0
    %346 = vmatprep.subr.mxu0 0.0
    %347 = vmatpush1.msra.mxu0 0.0
    %348 = vmatprep.subr.mxu0 0.0
    %349 = vmatpush1.msra.mxu0 0.0
    %350 = vmatprep.subr.mxu0 0.0
    %351 = vmatpush1.msra.mxu0 0.0
    %352 = vmatprep.subr.mxu0 0.0
    %353 = vmatpush1.msra.mxu0 0.0
    %354 = vmatprep.subr.mxu0 0.0
    %355 = vmatpush1.msra.mxu0 0.0
    %356 = vmatprep.subr.mxu0 0.0
    %357 = vmatpush1.msra.mxu0 0.0
    %358 = vmatprep.subr.mxu0 0.0
    %359 = vmatpush1.msra.mxu0 0.0
    %360 = vmatprep.subr.mxu0 0.0
    %361 = vmatpush1.msra.mxu0 0.0
    %362 = vmatprep.subr.mxu0 0.0
    %363 = vmatpush1.msra.mxu0 0.0
    %364 = vmatprep.subr.mxu0 0.0
    %365 = vmatpush1.msra.mxu0 0.0
    %366 = vmatprep.subr.mxu0 0.0
    %367 = vmatpush1.msra.mxu0 0.0
    %368 = vmatprep.subr.mxu0 0.0
    %369 = vmatpush1.msra.mxu0 0.0
    %370 = vmatprep.mubr.f32.mxu0 0.0
    %371 = vmatmul.mubr.f32.gmra.mrb[0].mxu0 %v304
    %v372 = vpop.f32.mrb[0].mxu0
    %v373 = vadd.f32 0.0, %v372
    %v374 = vpop.f32.mrb[0].mxu0
    %375 = vdwg.mxu0
    %v376 = vrcp.pop %v373
    %v377 = vmul.f32 %v296, %v376
    %v378 = vld [vmem:[%s8] sm:$0xff]
    %v379 = vld [vmem:[%s8 + $0x8] sm:$0xff]
    %v380 = vld [vmem:[%s8 + $0x10] sm:$0xff]
    %v381 = vld [vmem:[%s8 + $0x18] sm:$0xff]
    %v382 = vld [vmem:[%s8 + $0x20] sm:$0xff]
    %v383 = vld [vmem:[%s8 + $0x28] sm:$0xff]
    %vm384 = vcmask 64512
    %v386 = vsel %vm384, %v378, 0
    %v389 = vsel %vm384, %v379, 0
    %v392 = vsel %vm384, %v380, 0
    %v395 = vsel %vm384, %v381, 0
    %v398 = vsel %vm384, %v382, 0
    %v401 = vsel %vm384, %v383, 0
    %403 = vmatprep.subr.mxu0 0.0
    %404 = vmatpush1.msra.mxu0 %v119
    %405 = vmatprep.subr.mxu0 0.0
    %406 = vmatpush1.msra.mxu0 0.0
    %407 = vmatprep.subr.mxu0 0.0
    %408 = vmatpush1.msra.mxu0 0.0
    %409 = vmatprep.subr.mxu0 0.0
    %410 = vmatpush1.msra.mxu0 0.0
    %411 = vmatprep.subr.mxu0 0.0
    %412 = vmatpush1.msra.mxu0 0.0
    %413 = vmatprep.subr.mxu0 0.0
    %414 = vmatpush1.msra.mxu0 0.0
    %415 = vmatprep.subr.mxu0 0.0
    %416 = vmatpush1.msra.mxu0 0.0
    %417 = vmatprep.subr.mxu0 0.0
    %418 = vmatpush1.msra.mxu0 0.0
    %419 = vmatprep.subr.mxu0 0.0
    %420 = vmatpush1.msra.mxu0 0.0
    %421 = vmatprep.subr.mxu0 0.0
    %422 = vmatpush1.msra.mxu0 0.0
    %423 = vmatprep.subr.mxu0 0.0
    %424 = vmatpush1.msra.mxu0 0.0
    %425 = vmatprep.subr.mxu0 0.0
    %426 = vmatpush1.msra.mxu0 0.0
    %427 = vmatprep.subr.mxu0 0.0
    %428 = vmatpush1.msra.mxu0 0.0
    %429 = vmatprep.subr.mxu0 0.0
    %430 = vmatpush1.msra.mxu0 0.0
    %431 = vmatprep.subr.mxu0 0.0
    %432 = vmatpush1.msra.mxu0 0.0
    %433 = vmatprep.subr.mxu0 0.0
    %434 = vmatpush1.msra.mxu0 0.0
    %435 = vmatprep.subr.mxu0 0.0
    %436 = vmatpush1.msra.mxu0 0.0
    %437 = vmatprep.subr.mxu0 0.0
    %438 = vmatpush1.msra.mxu0 0.0
    %439 = vmatprep.subr.mxu0 0.0
    %440 = vmatpush1.msra.mxu0 0.0
    %441 = vmatprep.subr.mxu0 0.0
    %442 = vmatpush1.msra.mxu0 0.0
    %443 = vmatprep.subr.mxu0 0.0
    %444 = vmatpush1.msra.mxu0 0.0
    %445 = vmatprep.subr.mxu0 0.0
    %446 = vmatpush1.msra.mxu0 0.0
    %447 = vmatprep.subr.mxu0 0.0
    %448 = vmatpush1.msra.mxu0 0.0
    %449 = vmatprep.subr.mxu0 0.0
    %450 = vmatpush1.msra.mxu0 0.0
    %451 = vmatprep.subr.mxu0 0.0
    %452 = vmatpush1.msra.mxu0 0.0
    %453 = vmatprep.subr.mxu0 0.0
    %454 = vmatpush1.msra.mxu0 0.0
    %455 = vmatprep.subr.mxu0 0.0
    %456 = vmatpush1.msra.mxu0 0.0
    %457 = vmatprep.subr.mxu0 0.0
    %458 = vmatpush1.msra.mxu0 0.0
    %459 = vmatprep.subr.mxu0 0.0
    %460 = vmatpush1.msra.mxu0 0.0
    %461 = vmatprep.subr.mxu0 0.0
    %462 = vmatpush1.msra.mxu0 0.0
    %463 = vmatprep.subr.mxu0 0.0
    %464 = vmatpush1.msra.mxu0 0.0
    %465 = vmatprep.subr.mxu0 0.0
    %466 = vmatpush1.msra.mxu0 0.0
    %467 = vmatprep.mubr.f32.mxu0 0.0
    %468 = vmatmul.mubr.f32.gmra.mrb[0].mxu0 %v386
    %v469 = vpop.f32.mrb[0].mxu0
    %v470 = vadd.f32 0.0, %v469
    %v471 = vpop.f32.mrb[0].mxu0
    %472 = vmatprep.mubr.f32.mxu0 0.0
    %473 = vmatmul.mubr.f32.gmra.mrb[0].mxu0 %v389
    %v474 = vpop.f32.mrb[0].mxu0
    %v475 = vadd.f32 0.0, %v474
    %v476 = vpop.f32.mrb[0].mxu0
    %477 = vmatprep.mubr.f32.mxu0 0.0
    %478 = vmatmul.mubr.f32.gmra.mrb[0].mxu0 %v392
    %v479 = vpop.f32.mrb[0].mxu0
    %v480 = vadd.f32 0.0, %v479
    %v481 = vpop.f32.mrb[0].mxu0
    %482 = vmatprep.mubr.f32.mxu0 0.0
    %483 = vmatmul.mubr.f32.gmra.mrb[0].mxu0 %v395
    %v484 = vpop.f32.mrb[0].mxu0
    %v485 = vadd.f32 0.0, %v484
    %v486 = vpop.f32.mrb[0].mxu0
    %487 = vmatprep.mubr.f32.mxu0 0.0
    %488 = vmatmul.mubr.f32.gmra.mrb[0].mxu0 %v398
    %v489 = vpop.f32.mrb[0].mxu0
    %v490 = vadd.f32 0.0, %v489
    %v491 = vpop.f32.mrb[0].mxu0
    %492 = vmatprep.mubr.f32.mxu0 0.0
    %493 = vmatmul.mubr.f32.gmra.mrb[0].mxu0 %v401
    %v494 = vpop.f32.mrb[0].mxu0
    %v495 = vadd.f32 0.0, %v494
    %v496 = vpop.f32.mrb[0].mxu0
    %497 = vdwg.mxu0
    %v498 = vmul.f32 %v470, %v297
    %v499 = vmul.f32 %v475, %v298
    %v500 = vmul.f32 %v480, %v299
    %v501 = vmul.f32 %v485, %v300
    %v502 = vmul.f32 %v490, %v301
    %v503 = vmul.f32 %v495, %v302
    %v504 = vld [vmem:[%s6] sm:$0x1]
    %v506 = vlaneseq
    %v507 = vshrl.u32 %v506, 7
    %v508 = vsub.s32 0, %v507
    %v509 = vrot.slane %v504, %v508
    %v512 = vsel %vm290, %v377, 0
    %514 = vmatprep.subr.mxu0 0.0
    %515 = vmatpush1.msra.mxu0 %v498
    %516 = vmatprep.subr.mxu0 0.0
    %517 = vmatpush1.msra.mxu0 %v499
    %518 = vmatprep.subr.mxu0 0.0
    %519 = vmatpush1.msra.mxu0 %v500
    %520 = vmatprep.subr.mxu0 0.0
    %521 = vmatpush1.msra.mxu0 %v501
    %522 = vmatprep.subr.mxu0 0.0
    %523 = vmatpush1.msra.mxu0 %v502
    %524 = vmatprep.subr.mxu0 0.0
    %525 = vmatpush1.msra.mxu0 %v503
    %526 = vmatprep.subr.mxu0 0.0
    %527 = vmatpush1.msra.mxu0 0.0
    %528 = vmatprep.subr.mxu0 0.0
    %529 = vmatpush1.msra.mxu0 0.0
    %530 = vmatprep.subr.mxu0 0.0
    %531 = vmatpush1.msra.mxu0 0.0
    %532 = vmatprep.subr.mxu0 0.0
    %533 = vmatpush1.msra.mxu0 0.0
    %534 = vmatprep.subr.mxu0 0.0
    %535 = vmatpush1.msra.mxu0 0.0
    %536 = vmatprep.subr.mxu0 0.0
    %537 = vmatpush1.msra.mxu0 0.0
    %538 = vmatprep.subr.mxu0 0.0
    %539 = vmatpush1.msra.mxu0 0.0
    %540 = vmatprep.subr.mxu0 0.0
    %541 = vmatpush1.msra.mxu0 0.0
    %542 = vmatprep.subr.mxu0 0.0
    %543 = vmatpush1.msra.mxu0 0.0
    %544 = vmatprep.subr.mxu0 0.0
    %545 = vmatpush1.msra.mxu0 0.0
    %546 = vmatprep.subr.mxu0 0.0
    %547 = vmatpush1.msra.mxu0 0.0
    %548 = vmatprep.subr.mxu0 0.0
    %549 = vmatpush1.msra.mxu0 0.0
    %550 = vmatprep.subr.mxu0 0.0
    %551 = vmatpush1.msra.mxu0 0.0
    %552 = vmatprep.subr.mxu0 0.0
    %553 = vmatpush1.msra.mxu0 0.0
    %554 = vmatprep.subr.mxu0 0.0
    %555 = vmatpush1.msra.mxu0 0.0
    %556 = vmatprep.subr.mxu0 0.0
    %557 = vmatpush1.msra.mxu0 0.0
    %558 = vmatprep.subr.mxu0 0.0
    %559 = vmatpush1.msra.mxu0 0.0
    %560 = vmatprep.subr.mxu0 0.0
    %561 = vmatpush1.msra.mxu0 0.0
    %562 = vmatprep.subr.mxu0 0.0
    %563 = vmatpush1.msra.mxu0 0.0
    %564 = vmatprep.subr.mxu0 0.0
    %565 = vmatpush1.msra.mxu0 0.0
    %566 = vmatprep.subr.mxu0 0.0
    %567 = vmatpush1.msra.mxu0 0.0
    %568 = vmatprep.subr.mxu0 0.0
    %569 = vmatpush1.msra.mxu0 0.0
    %570 = vmatprep.subr.mxu0 0.0
    %571 = vmatpush1.msra.mxu0 0.0
    %572 = vmatprep.subr.mxu0 0.0
    %573 = vmatpush1.msra.mxu0 0.0
    %574 = vmatprep.subr.mxu0 0.0
    %575 = vmatpush1.msra.mxu0 0.0
    %576 = vmatprep.subr.mxu0 0.0
    %577 = vmatpush1.msra.mxu0 0.0
    %578 = vmatprep.mubr.f32.mxu0 0.0
    %579 = vmatmul.mubr.f32.gmra.mrb[0].mxu0 %v512
    %v580 = vpop.f32.mrb[0].mxu0
    %v581 = vadd.f32 %v509, %v580
    %v582 = vpop.f32.mrb[0].mxu0
    %583 = vdwg.mxu0
    %vm584 = vcmp.gt.f32.partialorder %v581, 0.0
    %v585 = vmul.f32 %v581, 1.442695
    %v586 = vpow.pop %v585
    %v587 = vsub.f32 %v586, 1.0
    %v588 = vsel %vm584, %v581, %v587
    %v589 = vld [vmem:[%s9] sm:$0xff]
    %v590 = vld [vmem:[%s9 + $0x8] sm:$0xff]
    %v591 = vld [vmem:[%s9 + $0x10] sm:$0xff]
    %v592 = vld [vmem:[%s9 + $0x18] sm:$0xff]
    %v593 = vld [vmem:[%s9 + $0x20] sm:$0xff]
    %v594 = vld [vmem:[%s9 + $0x28] sm:$0xff]
    %v595 = vld [vmem:[%s9 + $0x30] sm:$0xff]
    %v596 = vld [vmem:[%s9 + $0x38] sm:$0xff]
    %v597 = vld [vmem:[%s9 + $0x40] sm:$0xff]
    %v598 = vld [vmem:[%s9 + $0x48] sm:$0xff]
    %v599 = vld [vmem:[%s9 + $0x50] sm:$0xff]
    %v600 = vld [vmem:[%s9 + $0x58] sm:$0xff]
    %v601 = vld [vmem:[%s9 + $0x60] sm:$0xff]
    %v602 = vld [vmem:[%s9 + $0x68] sm:$0xff]
    %v603 = vld [vmem:[%s9 + $0x70] sm:$0xff]
    %v604 = vld [vmem:[%s9 + $0x78] sm:$0xff]
    %v605 = vld [vmem:[%s9 + $0x80] sm:$0xff]
    %v606 = vld [vmem:[%s9 + $0x88] sm:$0xff]
    %v607 = vld [vmem:[%s10] sm:$0x7]
    %v609 = vlaneseq
    %v610 = vshrl.u32 %v609, 7
    %v611 = vsub.s32 0, %v610
    %v612 = vrot.slane %v607, %v611
    %v613 = vlaneseq
    %v614 = vshrl.u32 %v613, 7
    %v615 = vsub.s32 1, %v614
    %v616 = vrot.slane %v607, %v615
    %v617 = vlaneseq
    %v618 = vshrl.u32 %v617, 7
    %v619 = vsub.s32 2, %v618
    %v620 = vrot.slane %v607, %v619
    %v625 = vsel %vm290, %v588, 0
    %627 = vmatprep.subr.mxu0 %v590
    %628 = vmatpush1.msra.mxu0 %v589
    %629 = vmatprep.subr.mxu0 %v593
    %630 = vmatpush1.msra.mxu0 %v592
    %631 = vmatprep.subr.mxu0 %v596
    %632 = vmatpush1.msra.mxu0 %v595
    %633 = vmatprep.subr.mxu0 %v599
    %634 = vmatpush1.msra.mxu0 %v598
    %635 = vmatprep.subr.mxu0 %v602
    %636 = vmatpush1.msra.mxu0 %v601
    %637 = vmatprep.subr.mxu0 %v605
    %638 = vmatpush1.msra.mxu0 %v604
    %639 = vmatprep.subr.mxu0 0.0
    %640 = vmatpush1.msra.mxu0 0.0
    %641 = vmatprep.subr.mxu0 0.0
    %642 = vmatpush1.msra.mxu0 0.0
    %643 = vmatprep.subr.mxu0 0.0
    %644 = vmatpush1.msra.mxu0 0.0
    %645 = vmatprep.subr.mxu0 0.0
    %646 = vmatpush1.msra.mxu0 0.0
    %647 = vmatprep.subr.mxu0 0.0
    %648 = vmatpush1.msra.mxu0 0.0
    %649 = vmatprep.subr.mxu0 0.0
    %650 = vmatpush1.msra.mxu0 0.0
    %651 = vmatprep.subr.mxu0 0.0
    %652 = vmatpush1.msra.mxu0 0.0
    %653 = vmatprep.subr.mxu0 0.0
    %654 = vmatpush1.msra.mxu0 0.0
    %655 = vmatprep.subr.mxu0 0.0
    %656 = vmatpush1.msra.mxu0 0.0
    %657 = vmatprep.subr.mxu0 0.0
    %658 = vmatpush1.msra.mxu0 0.0
    %659 = vmatprep.subr.mxu0 0.0
    %660 = vmatpush1.msra.mxu0 0.0
    %661 = vmatprep.subr.mxu0 0.0
    %662 = vmatpush1.msra.mxu0 0.0
    %663 = vmatprep.subr.mxu0 0.0
    %664 = vmatpush1.msra.mxu0 0.0
    %665 = vmatprep.subr.mxu0 0.0
    %666 = vmatpush1.msra.mxu0 0.0
    %667 = vmatprep.subr.mxu0 0.0
    %668 = vmatpush1.msra.mxu0 0.0
    %669 = vmatprep.subr.mxu0 0.0
    %670 = vmatpush1.msra.mxu0 0.0
    %671 = vmatprep.subr.mxu0 0.0
    %672 = vmatpush1.msra.mxu0 0.0
    %673 = vmatprep.subr.mxu0 0.0
    %674 = vmatpush1.msra.mxu0 0.0
    %675 = vmatprep.subr.mxu0 0.0
    %676 = vmatpush1.msra.mxu0 0.0
    %677 = vmatprep.subr.mxu0 0.0
    %678 = vmatpush1.msra.mxu0 0.0
    %679 = vmatprep.subr.mxu0 0.0
    %680 = vmatpush1.msra.mxu0 0.0
    %681 = vmatprep.subr.mxu0 0.0
    %682 = vmatpush1.msra.mxu0 0.0
    %683 = vmatprep.subr.mxu0 0.0
    %684 = vmatpush1.msra.mxu0 0.0
    %685 = vmatprep.subr.mxu0 0.0
    %686 = vmatpush1.msra.mxu0 0.0
    %687 = vmatprep.subr.mxu0 0.0
    %688 = vmatpush1.msra.mxu0 0.0
    %689 = vmatprep.subr.mxu0 0.0
    %690 = vmatpush1.msra.mxu0 0.0
    %691 = vmatprep.mubr.f32.mxu0 0.0
    %692 = vmatmul.mubr.f32.gmra.mrb[0].mxu0 %v625
    %v693 = vpop.f32.mrb[0].mxu0
    %v694 = vadd.f32 %v612, %v693
    %v695 = vpop.f32.mrb[0].mxu0
    %v696 = vadd.f32 %v616, %v695
    %697 = vdwg.mxu0
    %698 = vmatprep.subr.mxu0 0.0
    %699 = vmatpush1.msra.mxu0 %v591
    %700 = vmatprep.subr.mxu0 0.0
    %701 = vmatpush1.msra.mxu0 %v594
    %702 = vmatprep.subr.mxu0 0.0
    %703 = vmatpush1.msra.mxu0 %v597
    %704 = vmatprep.subr.mxu0 0.0
    %705 = vmatpush1.msra.mxu0 %v600
    %706 = vmatprep.subr.mxu0 0.0
    %707 = vmatpush1.msra.mxu0 %v603
    %708 = vmatprep.subr.mxu0 0.0
    %709 = vmatpush1.msra.mxu0 %v606
    %710 = vmatprep.subr.mxu0 0.0
    %711 = vmatpush1.msra.mxu0 0.0
    %712 = vmatprep.subr.mxu0 0.0
    %713 = vmatpush1.msra.mxu0 0.0
    %714 = vmatprep.subr.mxu0 0.0
    %715 = vmatpush1.msra.mxu0 0.0
    %716 = vmatprep.subr.mxu0 0.0
    %717 = vmatpush1.msra.mxu0 0.0
    %718 = vmatprep.subr.mxu0 0.0
    %719 = vmatpush1.msra.mxu0 0.0
    %720 = vmatprep.subr.mxu0 0.0
    %721 = vmatpush1.msra.mxu0 0.0
    %722 = vmatprep.subr.mxu0 0.0
    %723 = vmatpush1.msra.mxu0 0.0
    %724 = vmatprep.subr.mxu0 0.0
    %725 = vmatpush1.msra.mxu0 0.0
    %726 = vmatprep.subr.mxu0 0.0
    %727 = vmatpush1.msra.mxu0 0.0
    %728 = vmatprep.subr.mxu0 0.0
    %729 = vmatpush1.msra.mxu0 0.0
    %730 = vmatprep.subr.mxu0 0.0
    %731 = vmatpush1.msra.mxu0 0.0
    %732 = vmatprep.subr.mxu0 0.0
    %733 = vmatpush1.msra.mxu0 0.0
    %734 = vmatprep.subr.mxu0 0.0
    %735 = vmatpush1.msra.mxu0 0.0
    %736 = vmatprep.subr.mxu0 0.0
    %737 = vmatpush1.msra.mxu0 0.0
    %738 = vmatprep.subr.mxu0 0.0
    %739 = vmatpush1.msra.mxu0 0.0
    %740 = vmatprep.subr.mxu0 0.0
    %741 = vmatpush1.msra.mxu0 0.0
    %742 = vmatprep.subr.mxu0 0.0
    %743 = vmatpush1.msra.mxu0 0.0
    %744 = vmatprep.subr.mxu0 0.0
    %745 = vmatpush1.msra.mxu0 0.0
    %746 = vmatprep.subr.mxu0 0.0
    %747 = vmatpush1.msra.mxu0 0.0
    %748 = vmatprep.subr.mxu0 0.0
    %749 = vmatpush1.msra.mxu0 0.0
    %750 = vmatprep.subr.mxu0 0.0
    %751 = vmatpush1.msra.mxu0 0.0
    %752 = vmatprep.subr.mxu0 0.0
    %753 = vmatpush1.msra.mxu0 0.0
    %754 = vmatprep.subr.mxu0 0.0
    %755 = vmatpush1.msra.mxu0 0.0
    %756 = vmatprep.subr.mxu0 0.0
    %757 = vmatpush1.msra.mxu0 0.0
    %758 = vmatprep.subr.mxu0 0.0
    %759 = vmatpush1.msra.mxu0 0.0
    %760 = vmatprep.subr.mxu0 0.0
    %761 = vmatpush1.msra.mxu0 0.0
    %762 = vmatprep.mubr.f32.mxu0 0.0
    %763 = vmatmul.mubr.f32.gmra.mrb[0].mxu0 %v625
    %v764 = vpop.f32.mrb[0].mxu0
    %v765 = vadd.f32 %v620, %v764
    %v766 = vpop.f32.mrb[0].mxu0
    %767 = vdwg.mxu0
    %v768 = vtanh.pop %v694
    %v769 = vtanh.pop %v696
    %v770 = vtanh.pop %v765
    %v771 = vrot.slane %v768, 4
    %v772 = vadd.f32 %v768, %v771
    %v773 = vrot.slane %v772, 2
    %v774 = vadd.f32 %v772, %v773
    %v775 = vrot.slane %v774, 1
    %v776 = vadd.f32 %v774, %v775
    %v777 = vrot.slane %v769, 4
    %v778 = vadd.f32 %v769, %v777
    %v779 = vrot.slane %v778, 2
    %v780 = vadd.f32 %v778, %v779
    %v781 = vrot.slane %v780, 1
    %v782 = vadd.f32 %v780, %v781
    %v783 = vrot.slane %v770, 4
    %v784 = vadd.f32 %v770, %v783
    %v785 = vrot.slane %v784, 2
    %v786 = vadd.f32 %v784, %v785
    %v787 = vrot.slane %v786, 1
    %v788 = vadd.f32 %v786, %v787
    %v789 = vld [vmem:[%s11] sm:$0xff]
    %v790 = vld [vmem:[%s11 + $0x8] sm:$0xff]
    %v791 = vld [vmem:[%s11 + $0x10] sm:$0xff]
    %v792 = vld [vmem:[%s11 + $0x18] sm:$0xff]
    %v793 = vld [vmem:[%s11 + $0x20] sm:$0xff]
    %v794 = vld [vmem:[%s11 + $0x28] sm:$0xff]
    %v795 = vld [vmem:[%s11 + $0x30] sm:$0xff]
    %v796 = vld [vmem:[%s11 + $0x38] sm:$0xff]
    %v797 = vld [vmem:[%s11 + $0x40] sm:$0xff]
    %v798 = vld [vmem:[%s11 + $0x48] sm:$0xff]
    %v799 = vld [vmem:[%s11 + $0x50] sm:$0xff]
    %v800 = vld [vmem:[%s11 + $0x58] sm:$0xff]
    %v801 = vld [vmem:[%s11 + $0x60] sm:$0xff]
    %v802 = vld [vmem:[%s11 + $0x68] sm:$0xff]
    %v803 = vld [vmem:[%s11 + $0x70] sm:$0xff]
    %v804 = vld [vmem:[%s11 + $0x78] sm:$0xff]
    %v805 = vld [vmem:[%s11 + $0x80] sm:$0xff]
    %v806 = vld [vmem:[%s11 + $0x88] sm:$0xff]
    %v807 = vld [vmem:[%s11 + $0x90] sm:$0xff]
    %v808 = vld [vmem:[%s11 + $0x98] sm:$0xff]
    %v809 = vld [vmem:[%s11 + $0xa0] sm:$0xff]
    %v810 = vld [vmem:[%s11 + $0xa8] sm:$0xff]
    %v811 = vld [vmem:[%s11 + $0xb0] sm:$0xff]
    %v812 = vld [vmem:[%s11 + $0xb8] sm:$0xff]
    %v813 = vld [vmem:[%s11 + $0xc0] sm:$0xff]
    %v814 = vld [vmem:[%s11 + $0xc8] sm:$0xff]
    %v815 = vld [vmem:[%s11 + $0xd0] sm:$0xff]
    %v816 = vld [vmem:[%s11 + $0xd8] sm:$0xff]
    %v817 = vld [vmem:[%s11 + $0xe0] sm:$0xff]
    %v818 = vld [vmem:[%s11 + $0xe8] sm:$0xff]
    %v819 = vld [vmem:[%s11 + $0xf0] sm:$0xff]
    %v820 = vld [vmem:[%s11 + $0xf8] sm:$0xff]
    %v821 = vld [vmem:[%s11 + $0x100] sm:$0xff]
    %v822 = vld [vmem:[%s11 + $0x108] sm:$0xff]
    %v823 = vld [vmem:[%s11 + $0x110] sm:$0xff]
    %v824 = vld [vmem:[%s11 + $0x118] sm:$0xff]
    %v825 = vld [vmem:[%s11 + $0x120] sm:$0xff]
    %v826 = vld [vmem:[%s11 + $0x128] sm:$0xff]
    %v827 = vld [vmem:[%s11 + $0x130] sm:$0xff]
    %v828 = vld [vmem:[%s11 + $0x138] sm:$0xff]
    %v829 = vld [vmem:[%s11 + $0x140] sm:$0xff]
    %v830 = vld [vmem:[%s11 + $0x148] sm:$0xff]
    %v831 = vld [vmem:[%s11 + $0x150] sm:$0xff]
    %v832 = vld [vmem:[%s11 + $0x158] sm:$0xff]
    %v833 = vld [vmem:[%s11 + $0x160] sm:$0xff]
    %v834 = vld [vmem:[%s11 + $0x168] sm:$0xff]
    %v835 = vld [vmem:[%s11 + $0x170] sm:$0xff]
    %v836 = vld [vmem:[%s11 + $0x178] sm:$0xff]
    %837 = vmatprep.subr.mxu0 0.0
    %838 = vmatpush1.msra.mxu0 %v789
    %839 = vmatprep.subr.mxu0 0.0
    %840 = vmatpush1.msra.mxu0 %v790
    %841 = vmatprep.subr.mxu0 0.0
    %842 = vmatpush1.msra.mxu0 %v791
    %843 = vmatprep.subr.mxu0 0.0
    %844 = vmatpush1.msra.mxu0 %v792
    %845 = vmatprep.subr.mxu0 0.0
    %846 = vmatpush1.msra.mxu0 %v793
    %847 = vmatprep.subr.mxu0 0.0
    %848 = vmatpush1.msra.mxu0 %v794
    %849 = vmatprep.subr.mxu0 0.0
    %850 = vmatpush1.msra.mxu0 %v795
    %851 = vmatprep.subr.mxu0 0.0
    %852 = vmatpush1.msra.mxu0 %v796
    %853 = vmatprep.subr.mxu0 0.0
    %854 = vmatpush1.msra.mxu0 %v797
    %855 = vmatprep.subr.mxu0 0.0
    %856 = vmatpush1.msra.mxu0 %v798
    %857 = vmatprep.subr.mxu0 0.0
    %858 = vmatpush1.msra.mxu0 %v799
    %859 = vmatprep.subr.mxu0 0.0
    %860 = vmatpush1.msra.mxu0 %v800
    %861 = vmatprep.subr.mxu0 0.0
    %862 = vmatpush1.msra.mxu0 %v801
    %863 = vmatprep.subr.mxu0 0.0
    %864 = vmatpush1.msra.mxu0 %v802
    %865 = vmatprep.subr.mxu0 0.0
    %866 = vmatpush1.msra.mxu0 %v803
    %867 = vmatprep.subr.mxu0 0.0
    %868 = vmatpush1.msra.mxu0 %v804
    %869 = vmatprep.subr.mxu0 0.0
    %870 = vmatpush1.msra.mxu0 %v805
    %871 = vmatprep.subr.mxu0 0.0
    %872 = vmatpush1.msra.mxu0 %v806
    %873 = vmatprep.subr.mxu0 0.0
    %874 = vmatpush1.msra.mxu0 %v807
    %875 = vmatprep.subr.mxu0 0.0
    %876 = vmatpush1.msra.mxu0 %v808
    %877 = vmatprep.subr.mxu0 0.0
    %878 = vmatpush1.msra.mxu0 %v809
    %879 = vmatprep.subr.mxu0 0.0
    %880 = vmatpush1.msra.mxu0 %v810
    %881 = vmatprep.subr.mxu0 0.0
    %882 = vmatpush1.msra.mxu0 %v811
    %883 = vmatprep.subr.mxu0 0.0
    %884 = vmatpush1.msra.mxu0 %v812
    %885 = vmatprep.subr.mxu0 0.0
    %886 = vmatpush1.msra.mxu0 %v813
    %887 = vmatprep.subr.mxu0 0.0
    %888 = vmatpush1.msra.mxu0 %v814
    %889 = vmatprep.subr.mxu0 0.0
    %890 = vmatpush1.msra.mxu0 %v815
    %891 = vmatprep.subr.mxu0 0.0
    %892 = vmatpush1.msra.mxu0 %v816
    %893 = vmatprep.subr.mxu0 0.0
    %894 = vmatpush1.msra.mxu0 %v817
    %895 = vmatprep.subr.mxu0 0.0
    %896 = vmatpush1.msra.mxu0 %v818
    %897 = vmatprep.subr.mxu0 0.0
    %898 = vmatpush1.msra.mxu0 %v819
    %899 = vmatprep.subr.mxu0 0.0
    %900 = vmatpush1.msra.mxu0 %v820
    %901 = vmatprep.mubr.f32.mxu0 %v782
    %902 = vmatmul.mubr.f32.gmra.mrb[0].mxu0 %v776
    %v903 = vpop.f32.mrb[0].mxu0
    %v904 = vadd.f32 0.0, %v903
    %v905 = vpop.f32.mrb[0].mxu0
    %906 = vdwg.mxu0
    %907 = vmatprep.subr.mxu0 0.0
    %908 = vmatpush1.msra.mxu0 %v821
    %909 = vmatprep.subr.mxu0 0.0
    %910 = vmatpush1.msra.mxu0 %v822
    %911 = vmatprep.subr.mxu0 0.0
    %912 = vmatpush1.msra.mxu0 %v823
    %913 = vmatprep.subr.mxu0 0.0
    %914 = vmatpush1.msra.mxu0 %v824
    %915 = vmatprep.subr.mxu0 0.0
    %916 = vmatpush1.msra.mxu0 %v825
    %917 = vmatprep.subr.mxu0 0.0
    %918 = vmatpush1.msra.mxu0 %v826
    %919 = vmatprep.subr.mxu0 0.0
    %920 = vmatpush1.msra.mxu0 %v827
    %921 = vmatprep.subr.mxu0 0.0
    %922 = vmatpush1.msra.mxu0 %v828
    %923 = vmatprep.subr.mxu0 0.0
    %924 = vmatpush1.msra.mxu0 %v829
    %925 = vmatprep.subr.mxu0 0.0
    %926 = vmatpush1.msra.mxu0 %v830
    %927 = vmatprep.subr.mxu0 0.0
    %928 = vmatpush1.msra.mxu0 %v831
    %929 = vmatprep.subr.mxu0 0.0
    %930 = vmatpush1.msra.mxu0 %v832
    %931 = vmatprep.subr.mxu0 0.0
    %932 = vmatpush1.msra.mxu0 %v833
    %933 = vmatprep.subr.mxu0 0.0
    %934 = vmatpush1.msra.mxu0 %v834
    %935 = vmatprep.subr.mxu0 0.0
    %936 = vmatpush1.msra.mxu0 %v835
    %937 = vmatprep.subr.mxu0 0.0
    %938 = vmatpush1.msra.mxu0 %v836
    %939 = vmatprep.subr.mxu0 0.0
    %940 = vmatpush1.msra.mxu0 0.0
    %941 = vmatprep.subr.mxu0 0.0
    %942 = vmatpush1.msra.mxu0 0.0
    %943 = vmatprep.subr.mxu0 0.0
    %944 = vmatpush1.msra.mxu0 0.0
    %945 = vmatprep.subr.mxu0 0.0
    %946 = vmatpush1.msra.mxu0 0.0
    %947 = vmatprep.subr.mxu0 0.0
    %948 = vmatpush1.msra.mxu0 0.0
    %949 = vmatprep.subr.mxu0 0.0
    %950 = vmatpush1.msra.mxu0 0.0
    %951 = vmatprep.subr.mxu0 0.0
    %952 = vmatpush1.msra.mxu0 0.0
    %953 = vmatprep.subr.mxu0 0.0
    %954 = vmatpush1.msra.mxu0 0.0
    %955 = vmatprep.subr.mxu0 0.0
    %956 = vmatpush1.msra.mxu0 0.0
    %957 = vmatprep.subr.mxu0 0.0
    %958 = vmatpush1.msra.mxu0 0.0
    %959 = vmatprep.subr.mxu0 0.0
    %960 = vmatpush1.msra.mxu0 0.0
    %961 = vmatprep.subr.mxu0 0.0
    %962 = vmatpush1.msra.mxu0 0.0
    %963 = vmatprep.subr.mxu0 0.0
    %964 = vmatpush1.msra.mxu0 0.0
    %965 = vmatprep.subr.mxu0 0.0
    %966 = vmatpush1.msra.mxu0 0.0
    %967 = vmatprep.subr.mxu0 0.0
    %968 = vmatpush1.msra.mxu0 0.0
    %969 = vmatprep.subr.mxu0 0.0
    %970 = vmatpush1.msra.mxu0 0.0
    %971 = vmatprep.mubr.f32.mxu0 0.0
    %972 = vmatmul.mubr.f32.gmra.mrb[0].mxu0 %v788
    %v973 = vpop.f32.mrb[0].mxu0
    %v974 = vadd.f32 %v904, %v973
    %v975 = vpop.f32.mrb[0].mxu0
    %976 = vdwg.mxu0
    %vm977 = vcmask 385024
    %v978 = vsel %vm977, %v974, -inf
    %979 = vmax.xlane.f32.xlu0 %v978
    %v980 = vpop.xlane.xlu0 %979
    %v981 = vsub.f32 %v974, %v980
    %v982 = vmul.f32 %v981, 1.442695
    %v983 = vpow.pop %v982
    %v984 = vsel %vm977, %v983, 0.0
    %985 = vadd.xlane.f32.xlu0 %v984
    %v986 = vpop.xlane.xlu0 %985
    %v987 = vrcp.pop %v986
    %v988 = vmul.f32 16.0, %v987
    %v989 = vmul.f32 %v983, %v988
    %v990 = vlaneseq
    %v991 = vshrl.u32 %v990, 7
    %v992 = vsub.s32 0, %v991
    %v993 = vrot.slane %v989, %v992
    %v994 = vmul.f32 %v588, %v993
    %v995 = vld [vmem:[%s12] sm:$0xff]
    %v996 = vld [vmem:[%s12 + $0x8] sm:$0xff]
    %v997 = vld [vmem:[%s12 + $0x10] sm:$0xff]
    %v998 = vld [vmem:[%s12 + $0x18] sm:$0xff]
    %v999 = vld [vmem:[%s12 + $0x20] sm:$0xff]
    %v1000 = vld [vmem:[%s12 + $0x28] sm:$0xff]
    %v1002 = vsel %vm290, %v994, 0
    %1004 = vmatprep.subr.mxu0 0.0
    %1005 = vmatpush1.msra.mxu0 %v995
    %1006 = vmatprep.subr.mxu0 0.0
    %1007 = vmatpush1.msra.mxu0 %v996
    %1008 = vmatprep.subr.mxu0 0.0
    %1009 = vmatpush1.msra.mxu0 %v997
    %1010 = vmatprep.subr.mxu0 0.0
    %1011 = vmatpush1.msra.mxu0 %v998
    %1012 = vmatprep.subr.mxu0 0.0
    %1013 = vmatpush1.msra.mxu0 %v999
    %1014 = vmatprep.subr.mxu0 0.0
    %1015 = vmatpush1.msra.mxu0 %v1000
    %1016 = vmatprep.subr.mxu0 0.0
    %1017 = vmatpush1.msra.mxu0 0.0
    %1018 = vmatprep.subr.mxu0 0.0
    %1019 = vmatpush1.msra.mxu0 0.0
    %1020 = vmatprep.subr.mxu0 0.0
    %1021 = vmatpush1.msra.mxu0 0.0
    %1022 = vmatprep.subr.mxu0 0.0
    %1023 = vmatpush1.msra.mxu0 0.0
    %1024 = vmatprep.subr.mxu0 0.0
    %1025 = vmatpush1.msra.mxu0 0.0
    %1026 = vmatprep.subr.mxu0 0.0
    %1027 = vmatpush1.msra.mxu0 0.0
    %1028 = vmatprep.subr.mxu0 0.0
    %1029 = vmatpush1.msra.mxu0 0.0
    %1030 = vmatprep.subr.mxu0 0.0
    %1031 = vmatpush1.msra.mxu0 0.0
    %1032 = vmatprep.subr.mxu0 0.0
    %1033 = vmatpush1.msra.mxu0 0.0
    %1034 = vmatprep.subr.mxu0 0.0
    %1035 = vmatpush1.msra.mxu0 0.0
    %1036 = vmatprep.subr.mxu0 0.0
    %1037 = vmatpush1.msra.mxu0 0.0
    %1038 = vmatprep.subr.mxu0 0.0
    %1039 = vmatpush1.msra.mxu0 0.0
    %1040 = vmatprep.subr.mxu0 0.0
    %1041 = vmatpush1.msra.mxu0 0.0
    %1042 = vmatprep.subr.mxu0 0.0
    %1043 = vmatpush1.msra.mxu0 0.0
    %1044 = vmatprep.subr.mxu0 0.0
    %1045 = vmatpush1.msra.mxu0 0.0
    %1046 = vmatprep.subr.mxu0 0.0
    %1047 = vmatpush1.msra.mxu0 0.0
    %1048 = vmatprep.subr.mxu0 0.0
    %1049 = vmatpush1.msra.mxu0 0.0
    %1050 = vmatprep.subr.mxu0 0.0
    %1051 = vmatpush1.msra.mxu0 0.0
    %1052 = vmatprep.subr.mxu0 0.0
    %1053 = vmatpush1.msra.mxu0 0.0
    %1054 = vmatprep.subr.mxu0 0.0
    %1055 = vmatpush1.msra.mxu0 0.0
    %1056 = vmatprep.subr.mxu0 0.0
    %1057 = vmatpush1.msra.mxu0 0.0
    %1058 = vmatprep.subr.mxu0 0.0
    %1059 = vmatpush1.msra.mxu0 0.0
    %1060 = vmatprep.subr.mxu0 0.0
    %1061 = vmatpush1.msra.mxu0 0.0
    %1062 = vmatprep.subr.mxu0 0.0
    %1063 = vmatpush1.msra.mxu0 0.0
    %1064 = vmatprep.subr.mxu0 0.0
    %1065 = vmatpush1.msra.mxu0 0.0
    %1066 = vmatprep.subr.mxu0 0.0
    %1067 = vmatpush1.msra.mxu0 0.0
    %1068 = vmatprep.mubr.f32.mxu0 0.0
    %1069 = vmatmul.mubr.f32.gmra.mrb[0].mxu0 %v1002
    %v1070 = vpop.f32.mrb[0].mxu0
    %v1071 = vadd.f32 0.0, %v1070
    %v1072 = vpop.f32.mrb[0].mxu0
    %1073 = vdwg.mxu0
    %1074 = vst.msk [vmem:[#allocation2] sm:$0xff] %vm48, %v1071
    // Predicated region
    $region54: #{han_layer_forward.1} parent=1 // pred_check
      _
    $region55: #{han_layer_forward.1} parent=1 // pred_check_branch
      %1076 = sbr.rel (0) target = $region57
    $region56: #{han_layer_forward.1} parent=1 // pred_region
      %s1078 = ssub.s32 128, 128
      %1079 = vsyncadd [#allocation3], %s1078
      %s1081 = sshll.u32 [#allocation2], 4
      %s1082 = int_to_ptr.vmem [resolvable:$true] %s1081
      %1084 = dma.vmem_to_hbm [thread:$0]  %s1082, 128, %s13, [#allocation3]
    $region57: #{han_layer_forward.1} parent=1 // pred_fallthru
      _
    // Predicated region
    $region58: #{han_layer_forward.1} parent=1 // pred_check
      _
    $region59: #{han_layer_forward.1} parent=1 // pred_check_branch
      %1086 = sbr.rel (0) target = $region61
    $region60: #{han_layer_forward.1} parent=1 // pred_region
      %1087 = dma.done [#allocation3], 128
    $region61: #{han_layer_forward.1} parent=1 // pred_fallthru
      _
    %1088 = vsyncpa [#allocation3], 1

</llo_original>
